<compile_context>
chip_gen: v5e
topology: v5e:2x2
jax: 0.10.0
libtpu: 0.0.40
codegen_flags: <defaults>
</compile_context>

<pallas_src>
import jax
import jax.numpy as jnp
from jax.experimental import pallas as pl
from jax.experimental.pallas import tpu as pltpu

_LANE = 128      # vreg lane width
_SUBLANE = 8     # vreg sublane count (f32)


def _round_up(x, m):
    return ((x + m - 1) // m) * m


def _node_apply_kernel(h_ref, w_ref, b_ref, o_ref):
    # h_ref: (tm, in_feats)      bf16 node-feature tile
    # w_ref: (in_feats, out_pad) bf16 weight (resident, lane-padded)
    # b_ref: (1, out_pad)        f32 bias row (lane-padded)
    # o_ref: (tm, out_pad)       f32 output tile (lane-dense, unmasked stores)
    y = jnp.dot(h_ref[...], w_ref[...], preferred_element_type=jnp.float32)
    y = y + b_ref[...]                       # broadcast bias over rows (f32)
    o_ref[...] = jnp.maximum(y, 0.0).astype(o_ref.dtype)


def _vmem_bytes(tm, k, n_out):
    # Double-buffered h (bf16) + output (f32), plus W (bf16) and bias (f32)
    # (counted double-buffered too, to be conservative).
    return (2 * tm * k * 2) + (2 * tm * n_out * 4) + 2 * (k * n_out * 2 + n_out * 4)


def _choose_tm(n_rows, tm_max=512):
    # Prefer at least 2 grid steps so v7x can shard the parallel row axis
    # across its 2 TensorCores; otherwise take the biggest tile that fits.
    half = _round_up(-(-n_rows // 2), _SUBLANE)   # ceil(n/2) rounded to sublanes
    return max(_SUBLANE, min(tm_max, half))


@jax.jit
def node_apply(h, weight, bias):
    """ReLU(h @ weight.T + bias) via Pallas.

    h      : (N, in_feats)          float32 node features
    weight : (out_feats, in_feats)  float32 (PyTorch nn.Linear layout)
    bias   : (out_feats,)           float32
    returns: (N, out_feats)         float32
    """
    n, in_feats = h.shape
    out_feats = weight.shape[0]

    out_pad = _round_up(out_feats, _LANE)

    tm = _choose_tm(n)
    # Shrink tm if the double-buffered footprint would exceed ~40 MiB
    # (headroom for v7x's 64 MiB physical VMEM).
    while tm > _SUBLANE and _vmem_bytes(tm, in_feats, out_pad) > 40 * 1024 * 1024:
        tm = _round_up(max(_SUBLANE, tm // 2), _SUBLANE)

    n_pad = _round_up(n, tm)
    grid = (n_pad // tm,)

    # Wrapper-side glue (not the hot path): cast to bf16, transpose W once,
    # zero-pad rows of h and output columns of W / b.
    h_bf16 = h.astype(jnp.bfloat16)
    if n_pad != n:
        h_bf16 = jnp.pad(h_bf16, ((0, n_pad - n), (0, 0)))

    w_t = jnp.transpose(weight).astype(jnp.bfloat16)          # (in_feats, out_feats)
    b_f32 = bias.astype(jnp.float32)
    if out_pad != out_feats:
        w_t = jnp.pad(w_t, ((0, 0), (0, out_pad - out_feats)))
        b_f32 = jnp.pad(b_f32, (0, out_pad - out_feats))
    b2 = b_f32.reshape(1, out_pad)

    vmem_limit = int(min(48 * 1024 * 1024,
                         max(16 * 1024 * 1024,
                             2 * _vmem_bytes(tm, in_feats, out_pad))))

    out = pl.pallas_call(
        _node_apply_kernel,
        out_shape=jax.ShapeDtypeStruct((n_pad, out_pad), jnp.float32),
        grid_spec=pltpu.PrefetchScalarGridSpec(
            num_scalar_prefetch=0,
            grid=grid,
            in_specs=[
                pl.BlockSpec((tm, in_feats), lambda i: (i, 0)),         # h tile
                pl.BlockSpec((in_feats, out_pad), lambda i: (0, 0)),    # full W
                pl.BlockSpec((1, out_pad), lambda i: (0, 0)),           # bias row
            ],
            out_specs=pl.BlockSpec((tm, out_pad), lambda i: (i, 0)),
        ),
        compiler_params=pltpu.CompilerParams(
            dimension_semantics=("parallel",),
            vmem_limit_bytes=vmem_limit,
        ),
    )(h_bf16, w_t, b2)

    return out[:n, :out_feats]


if __name__ == "__main__":
    # Small shapes consistent with the module: N nodes, in_feats -> out_feats.
    N, IN_FEATS, OUT_FEATS = 128, 32, 64

    key = jax.random.PRNGKey(0)
    k_h, k_w, k_b = jax.random.split(key, 3)

    # Deterministic init mimicking nn.Linear default U[-1/sqrt(in), 1/sqrt(in)].
    bound = 1.0 / (IN_FEATS ** 0.5)
    w = jax.random.uniform(k_w, (OUT_FEATS, IN_FEATS), jnp.float32, -bound, bound)
    b = jax.random.uniform(k_b, (OUT_FEATS,), jnp.float32, -bound, bound)
    h = jax.random.normal(k_h, (N, IN_FEATS), jnp.float32)

    out = node_apply(h, w, b)
    out = jax.block_until_ready(out)

    # Correctness check against the plain-JAX reference of the PyTorch forward.
    # Tolerance accounts for bf16 streaming of h/W (f32 accumulate inside).
    ref = jnp.maximum(h @ w.T + b, 0.0)
    assert out.shape == (N, OUT_FEATS)
    assert jnp.allclose(out, ref, atol=3e-2, rtol=3e-2), float(jnp.max(jnp.abs(out - ref)))

    print("KERNEL_OK")
</pallas_src>

<mosaic_0001>
module attributes {stable_mosaic.version = 11 : i64} {
  func.func @_node_apply_kernel(%arg0: i32, %arg1: memref<64x32xbf16, #tpu.memory_space<vmem>>, %arg2: memref<32x128xbf16, #tpu.memory_space<vmem>>, %arg3: memref<1x128xf32, #tpu.memory_space<vmem>>, %arg4: memref<64x128xf32, #tpu.memory_space<vmem>>) attributes {dimension_semantics = [#tpu.dimension_semantics<parallel>], iteration_bounds = array<i64: 2>, scalar_prefetch = 0 : i64, scratch_operands = 0 : i64, tpu.core_type = #tpu.core_type<tc>, window_params = [{transform_indices = @transform_0, window_bounds = array<i64: 64, 32>}, {pipeline_mode = #tpu.pipeline_mode<synchronous>, transform_indices = @transform_1, window_bounds = array<i64: 32, 128>}, {pipeline_mode = #tpu.pipeline_mode<synchronous>, transform_indices = @transform_2, window_bounds = array<i64: 1, 128>}, {transform_indices = @transform_3, window_bounds = array<i64: 64, 128>}]} {
    %c0 = arith.constant 0 : index
    %c0_0 = arith.constant 0 : index
    %0 = vector.load %arg1[%c0, %c0_0] : memref<64x32xbf16, #tpu.memory_space<vmem>>, vector<64x32xbf16>
    %c0_1 = arith.constant 0 : index
    %c0_2 = arith.constant 0 : index
    %1 = vector.load %arg2[%c0_1, %c0_2] : memref<32x128xbf16, #tpu.memory_space<vmem>>, vector<32x128xbf16>
    %cst = arith.constant dense<0.000000e+00> : vector<64x128xf32>
    %2 = tpu.matmul %0, %1, %cst {dimension_numbers = #tpu.dot_dimension_numbers<[1], [0], [0], [1], [0, 0, 1, 1], [], []>} : vector<64x32xbf16>, vector<32x128xbf16>, vector<64x128xf32> -> vector<64x128xf32>
    %c0_3 = arith.constant 0 : index
    %c0_4 = arith.constant 0 : index
    %3 = vector.load %arg3[%c0_3, %c0_4] : memref<1x128xf32, #tpu.memory_space<vmem>>, vector<1x128xf32>
    %4 = vector.broadcast %3 : vector<1x128xf32> to vector<64x128xf32>
    %5 = arith.addf %2, %4 : vector<64x128xf32>
    %cst_5 = arith.constant 0.000000e+00 : f32
    %6 = vector.broadcast %cst_5 : f32 to vector<64x128xf32>
    %7 = arith.maximumf %5, %6 : vector<64x128xf32>
    %c0_6 = arith.constant 0 : index
    %c0_7 = arith.constant 0 : index
    %8 = vector.load %arg4[%c0_6, %c0_7] : memref<64x128xf32, #tpu.memory_space<vmem>>, vector<64x128xf32>
    tpu.vector_store %arg4[%c0_6, %c0_7], %7 {strides = array<i32>} : memref<64x128xf32, #tpu.memory_space<vmem>>, vector<64x128xf32>,
    return
  }
  func.func @transform_0(%arg0: i32) -> (i32, i32) {
    %c0_i32 = arith.constant 0 : i32
    %c0_i32_0 = arith.constant 0 : i32
    return %arg0, %c0_i32 : i32, i32
  }
  func.func @transform_1(%arg0: i32) -> (i32, i32) {
    %c0_i32 = arith.constant 0 : i32
    %c0_i32_0 = arith.constant 0 : i32
    %c0_i32_1 = arith.constant 0 : i32
    return %c0_i32, %c0_i32_0 : i32, i32
  }
  func.func @transform_2(%arg0: i32) -> (i32, i32) {
    %c0_i32 = arith.constant 0 : i32
    %c0_i32_0 = arith.constant 0 : i32
    %c0_i32_1 = arith.constant 0 : i32
    return %c0_i32, %c0_i32_0 : i32, i32
  }
  func.func @transform_3(%arg0: i32) -> (i32, i32) {
    %c0_i32 = arith.constant 0 : i32
    %c0_i32_0 = arith.constant 0 : i32
    return %arg0, %c0_i32 : i32, i32
  }
}

</mosaic_0001>

<llo_original>
// kernel: node_apply.1
$region0: #{node_apply.1}
  #allocation0 [shape = 'u32[]', space=smem, size = 0x4, offset = 0x4, fixed_abs, tag = 'smem constant byte address 0x4 - core index']
  #allocation1 [shape = 'u32[72,128]{1,0:T(1,128)}', space=vmem, size = 0x9000, scoped, tag = 'internal scratch']
  %s0 = inlined_call_operand.vmem [shape: bf16[128,32], index: 0, kind: input, shape index: {}]
  %s1 = inlined_call_operand.vmem [shape: bf16[32,128], index: 1, kind: input, shape index: {}]
  %s2 = inlined_call_operand.vmem [shape: f32[1,128], index: 2, kind: input, shape index: {}]
  %s3 = inlined_call_operand.vmem [shape: f32[128,128], index: 3, kind: output, shape index: {}]
  %s4 = sld [smem:[#allocation0]]
  $region45: #{node_apply.1} parent=0
    _
  %s6 = ssub.s32 1, %s4
  %s7 = scalar_select 0, %s6, %s4
  loop: start=0, step=1, limit=4
  $region2: #{node_apply.1} parent=0 // loop_pre_header
    _
  $region3: #{node_apply.1} parent=0 // loop_header
    %s9 = sphi 0, %s13
    %p10 = scmp.ge.s32.totalorder %s9, 4
    %s19 = sphi 0, %s21
    %s22 = sphi 0, %s19
    %s23 = sphi 0, %s22
    %s39 = sphi 0, %s23
    %s43 = sphi 0, %s43
    %s45 = sphi 0, %s43
    %s46 = sphi 0, %s45
    %s60 = sphi 0, %s46
    %s64 = sphi 0, %s64
    %s66 = sphi 0, %s64
    %s67 = sphi 0, %s66
    %s81 = sphi 0, %s67
    %s87 = sphi 0, %s89
    %s90 = sphi 0, %s87
    %s91 = sphi 0, %s90
    %s107 = sphi 0, %s91
  $region4: #{node_apply.1} parent=0 // loop_header_branch
    %12 = sbr.rel (%p10) target = $region8
  $region5: #{node_apply.1} parent=0 // loop_body
    %s14 = ssub.s32 %s9, 1
    %s15 = ssub.s32 %s9, 2
    %s16 = sadd.s32 %s9, 1
    %s17 = ssub.s32 %s9, %s16
    %p18 = scmp.eq.s32.totalorder %s17, 0
    %s20 = sadd.s32 %s19, 1
    %s21 = scalar_select %p18, %s19, %s20
    %p24 = pneg %p18
    %p25 = scmp.eq.s32.totalorder %s9, 1
    %p26 = por %p24, %p25
    %p27 = scmp.ne.s32.totalorder %s19, %s22
    %p28 = scmp.eq.s32.totalorder %s9, 0
    %p29 = por %p27, %p28
    %p30 = scmp.ne.s32.totalorder %s19, %s22
    %p31 = scmp.eq.s32.totalorder %s14, 1
    %p32 = por %p30, %p31
    %p33 = scmp.ne.s32.totalorder %s22, %s23
    %p34 = scmp.eq.s32.totalorder %s14, 0
    %p35 = por %p33, %p34
    %p36 = scmp.ne.s32.totalorder %s22, %s23
    %p37 = scmp.eq.s32.totalorder %s15, 1
    %p38 = por %p36, %p37
    %p40 = scmp.ne.s32.totalorder %s23, %s39
    %p41 = scmp.eq.s32.totalorder %s15, 0
    %p42 = por %p40, %p41
    %s44 = sadd.s32 %s43, 1
    %p47 = scmp.eq.s32.totalorder %s9, 1
    %p48 = scmp.ne.s32.totalorder %s43, %s45
    %p49 = scmp.eq.s32.totalorder %s9, 0
    %p50 = por %p48, %p49
    %p51 = scmp.ne.s32.totalorder %s43, %s45
    %p52 = scmp.eq.s32.totalorder %s14, 1
    %p53 = por %p51, %p52
    %p54 = scmp.ne.s32.totalorder %s45, %s46
    %p55 = scmp.eq.s32.totalorder %s14, 0
    %p56 = por %p54, %p55
    %p57 = scmp.ne.s32.totalorder %s45, %s46
    %p58 = scmp.eq.s32.totalorder %s15, 1
    %p59 = por %p57, %p58
    %p61 = scmp.ne.s32.totalorder %s46, %s60
    %p62 = scmp.eq.s32.totalorder %s15, 0
    %p63 = por %p61, %p62
    %s65 = sadd.s32 %s64, 1
    %p68 = scmp.eq.s32.totalorder %s9, 1
    %p69 = scmp.ne.s32.totalorder %s64, %s66
    %p70 = scmp.eq.s32.totalorder %s9, 0
    %p71 = por %p69, %p70
    %p72 = scmp.ne.s32.totalorder %s64, %s66
    %p73 = scmp.eq.s32.totalorder %s14, 1
    %p74 = por %p72, %p73
    %p75 = scmp.ne.s32.totalorder %s66, %s67
    %p76 = scmp.eq.s32.totalorder %s14, 0
    %p77 = por %p75, %p76
    %p78 = scmp.ne.s32.totalorder %s66, %s67
    %p79 = scmp.eq.s32.totalorder %s15, 1
    %p80 = por %p78, %p79
    %p82 = scmp.ne.s32.totalorder %s67, %s81
    %p83 = scmp.eq.s32.totalorder %s15, 0
    %p84 = por %p82, %p83
    %s85 = ssub.s32 %s9, %s16
    %p86 = scmp.eq.s32.totalorder %s85, 0
    %s88 = sadd.s32 %s87, 1
    %s89 = scalar_select %p86, %s87, %s88
    %p92 = pneg %p86
    %p93 = scmp.eq.s32.totalorder %s9, 1
    %p94 = por %p92, %p93
    %p95 = scmp.ne.s32.totalorder %s87, %s90
    %p96 = scmp.eq.s32.totalorder %s9, 0
    %p97 = por %p95, %p96
    %p98 = scmp.ne.s32.totalorder %s87, %s90
    %p99 = scmp.eq.s32.totalorder %s14, 1
    %p100 = por %p98, %p99
    %p101 = scmp.ne.s32.totalorder %s90, %s91
    %p102 = scmp.eq.s32.totalorder %s14, 0
    %p103 = por %p101, %p102
    %p104 = scmp.ne.s32.totalorder %s90, %s91
    %p105 = scmp.eq.s32.totalorder %s15, 1
    %p106 = por %p104, %p105
    %p108 = scmp.ne.s32.totalorder %s91, %s107
    %p109 = scmp.eq.s32.totalorder %s15, 0
    %p110 = por %p108, %p109
    %p111 = scmp.le.s32.totalorder 1, %s9
    %p112 = scmp.lt.s32.totalorder %s9, 3
    %p113 = pnand %p111, %p112
    %p114 = pneg %p113
    // Predicated region
    $region9: #{node_apply.1} parent=5 // pred_check
      _
    $region10: #{node_apply.1} parent=5 // pred_check_branch
      %116 = sbr.rel (%p113) target = $region12
    $region11: #{node_apply.1} parent=5 // pred_region
      %s117 = ssub.s32 %s9, 1
      // Predicated region
      $region13: #{node_apply.1} parent=11 // pred_check
        %p118 = pneg %p56
      $region14: #{node_apply.1} parent=11 // pred_check_branch
        %120 = sbr.rel (%p118) target = $region16
      $region15: #{node_apply.1} parent=11 // pred_region
        _
      $region16: #{node_apply.1} parent=11 // pred_fallthru
        _
      // Predicated region
      $region17: #{node_apply.1} parent=11 // pred_check
        %p121 = pneg %p77
      $region18: #{node_apply.1} parent=11 // pred_check_branch
        %123 = sbr.rel (%p121) target = $region20
      $region19: #{node_apply.1} parent=11 // pred_region
        _
      $region20: #{node_apply.1} parent=11 // pred_fallthru
        _
    $region12: #{node_apply.1} parent=5 // pred_fallthru
      _
    %p124 = scmp.lt.s32.totalorder %s9, 2
    // Predicated region
    $region21: #{node_apply.1} parent=5 // pred_check
      %p125 = pneg %p124
    $region22: #{node_apply.1} parent=5 // pred_check_branch
      %127 = sbr.rel (%p125) target = $region24
    $region23: #{node_apply.1} parent=5 // pred_region
      // Predicated region
      $region25: #{node_apply.1} parent=23 // pred_check
        %p128 = pneg %p29
      $region26: #{node_apply.1} parent=23 // pred_check_branch
        %130 = sbr.rel (%p128) target = $region28
      $region27: #{node_apply.1} parent=23 // pred_region
        %s131 = smul.u32 8, %s9
        %p132 = scmp.lt.s32.totalorder %s131, 15
        %s133 = scalar_select %p132, %s131, 15
        %s134 = smul.addr %s133, 4
        %s135 = scalar_lea.vmem %s0, %s134
        %s136 = smul.u32 8, %s9
      $region28: #{node_apply.1} parent=23 // pred_fallthru
        _
    $region24: #{node_apply.1} parent=5 // pred_fallthru
      _
    %p137 = scmp.le.s32.totalorder 1, %s9
    %p138 = scmp.lt.s32.totalorder %s9, 3
    %p139 = pnand %p137, %p138
    %p140 = pneg %p139
    // Predicated region
    $region29: #{node_apply.1} parent=5 // pred_check
      _
    $region30: #{node_apply.1} parent=5 // pred_check_branch
      %142 = sbr.rel (%p139) target = $region32
    $region31: #{node_apply.1} parent=5 // pred_region
      %s143 = ssub.s32 %s9, 1
      %s144 = smul.u32 8, %s14
      %p145 = scmp.lt.s32.totalorder %s144, 15
      %s146 = scalar_select %p145, %s144, 15
      %s147 = smul.addr %s146, 4
      %s148 = scalar_lea.vmem %s0, %s147
      %p149 = pneg %p35
      %p150 = pneg %p32
      %p151 = pneg %p56
      %p152 = pneg %p53
      %p153 = pneg %p77
      %p154 = pneg %p74
      %p155 = pneg %p103
      %p156 = pneg %p100
      %s157 = smul.u32 8, %s14
      %p158 = scmp.lt.s32.totalorder %s157, 15
      %s159 = scalar_select %p158, %s157, 15
      %s160 = smul.addr %s159, 8
      %s161 = scalar_lea.vmem %s3, %s160
      %s162 = smul.u32 8, %s14
      %p163 = scmp.lt.s32.totalorder %s162, 15
      %s164 = scalar_select %p163, %s162, 15
      %s165 = smul.addr %s164, 4
      %s166 = scalar_lea.vmem %s0, %s165
      %s167 = smul.u32 8, %s14
      %s168 = smul.u32 8, %s14
      %p169 = scmp.lt.s32.totalorder %s168, 15
      %s170 = scalar_select %p169, %s168, 15
      %s171 = smul.addr %s170, 8
      %s172 = scalar_lea.vmem %s3, %s171
      %s173 = smul.u32 8, %s14
      %v175 = vld [vmem:[%s166] sm:$0xf]
      %v176 = vld [vmem:[%s166 + $0x4] sm:$0xf]
      %v177 = vld [vmem:[%s166 + $0x8] sm:$0xf]
      %v178 = vld [vmem:[%s166 + $0xc] sm:$0xf]
      %v179 = vld [vmem:[%s166 + $0x10] sm:$0xf]
      %v180 = vld [vmem:[%s166 + $0x14] sm:$0xf]
      %v181 = vld [vmem:[%s166 + $0x18] sm:$0xf]
      %v182 = vld [vmem:[%s166 + $0x1c] sm:$0xf]
      %v183 = vld [vmem:[%s1] sm:$0xf]
      %v184 = vld [vmem:[%s1 + $0x4] sm:$0xf]
      %v185 = vld [vmem:[%s1 + $0x8] sm:$0xf]
      %v186 = vld [vmem:[%s1 + $0xc] sm:$0xf]
      %v187 = vld [vmem:[%s2] sm:$0x1]
      %v189 = vperm.slane %v187, 0
      %v199 = vunpack.c.l.b16 %v175
      %v200 = vunpack.c.l.b16 %v176
      %v201 = vunpack.c.l.b16 %v177
      %v202 = vunpack.c.l.b16 %v178
      %v203 = vunpack.c.l.b16 %v179
      %v204 = vunpack.c.l.b16 %v180
      %v205 = vunpack.c.l.b16 %v181
      %v206 = vunpack.c.l.b16 %v182
      %v207 = vpack.c.b16 %v200, %v199
      %v208 = vpack.c.b16 %v202, %v201
      %v209 = vpack.c.b16 %v204, %v203
      %v210 = vpack.c.b16 %v206, %v205
      %v215 = vunpack.c.l.b16 %v183
      %v216 = vunpack.c.l.b16 %v184
      %v217 = vunpack.c.l.b16 %v185
      %v218 = vunpack.c.l.b16 %v186
      %v219 = vpack.c.b16 %v216, %v215
      %v220 = vpack.c.b16 %v218, %v217
      %vm223 = vcmask 261120
      %v225 = vsel %vm223, %v207, 0
      %v228 = vsel %vm223, %v208, 0
      %v231 = vsel %vm223, %v209, 0
      %v234 = vsel %vm223, %v210, 0
      %236 = vmatpush.bf16.msra.mxu0 0
      %237 = vmatpush.bf16.msra.mxu0 0
      %238 = vmatpush.bf16.msra.mxu0 0
      %239 = vmatpush.bf16.msra.mxu0 0
      %240 = vmatpush.bf16.msra.mxu0 0
      %241 = vmatpush.bf16.msra.mxu0 0
      %242 = vmatpush.bf16.msra.mxu0 %v220
      %243 = vmatpush.bf16.msra.mxu0 %v219
      %244 = vmatmul.bf16.gmra.mxu0 %v225
      %v245 = vpop.f32.mrf.mxu0
      %v246 = vadd.f32 %v189, %v245
      %v247 = vpop.f32.mrf.mxu0
      %v248 = vadd.f32 %v189, %v247
      %249 = vmatmul.bf16.gmra.mxu0 %v228
      %v250 = vpop.f32.mrf.mxu0
      %v251 = vadd.f32 %v189, %v250
      %v252 = vpop.f32.mrf.mxu0
      %v253 = vadd.f32 %v189, %v252
      %254 = vmatmul.bf16.gmra.mxu0 %v231
      %v255 = vpop.f32.mrf.mxu0
      %v256 = vadd.f32 %v189, %v255
      %v257 = vpop.f32.mrf.mxu0
      %v258 = vadd.f32 %v189, %v257
      %259 = vmatmul.bf16.gmra.mxu0 %v234
      %v260 = vpop.f32.mrf.mxu0
      %v261 = vadd.f32 %v189, %v260
      %v262 = vpop.f32.mrf.mxu0
      %v263 = vadd.f32 %v189, %v262
      %264 = vdwg.mxu0
      %v265 = vmax.f32 %v246, 0.0
      %v266 = vmax.f32 %v248, 0.0
      %v267 = vmax.f32 %v251, 0.0
      %v268 = vmax.f32 %v253, 0.0
      %v269 = vmax.f32 %v256, 0.0
      %v270 = vmax.f32 %v258, 0.0
      %v271 = vmax.f32 %v261, 0.0
      %v272 = vmax.f32 %v263, 0.0
      %273 = vst [vmem:[%s172] sm:$0xff] %v265
      %274 = vst [vmem:[%s172 + $0x8] sm:$0xff] %v266
      %275 = vst [vmem:[%s172 + $0x10] sm:$0xff] %v267
      %276 = vst [vmem:[%s172 + $0x18] sm:$0xff] %v268
      %277 = vst [vmem:[%s172 + $0x20] sm:$0xff] %v269
      %278 = vst [vmem:[%s172 + $0x28] sm:$0xff] %v270
      %279 = vst [vmem:[%s172 + $0x30] sm:$0xff] %v271
      %280 = vst [vmem:[%s172 + $0x38] sm:$0xff] %v272
      %s281 = smul.u32 8, %s14
      %p282 = scmp.lt.s32.totalorder %s281, 15
      %s283 = scalar_select %p282, %s281, 15
      %s284 = smul.addr %s283, 8
      %s285 = scalar_lea.vmem %s3, %s284
      // Predicated region
      $region33: #{node_apply.1} parent=31 // pred_check
        %p286 = pneg %p100
      $region34: #{node_apply.1} parent=31 // pred_check_branch
        %288 = sbr.rel (%p286) target = $region36
      $region35: #{node_apply.1} parent=31 // pred_region
        %s289 = smul.u32 8, %s14
      $region36: #{node_apply.1} parent=31 // pred_fallthru
        _
    $region32: #{node_apply.1} parent=5 // pred_fallthru
      _
    %p290 = scmp.le.s32.totalorder 2, %s9
    // Predicated region
    $region37: #{node_apply.1} parent=5 // pred_check
      %p291 = pneg %p290
    $region38: #{node_apply.1} parent=5 // pred_check_branch
      %293 = sbr.rel (%p291) target = $region40
    $region39: #{node_apply.1} parent=5 // pred_region
      %s294 = ssub.s32 %s9, 2
      // Predicated region
      $region41: #{node_apply.1} parent=39 // pred_check
        %p295 = pneg %p106
      $region42: #{node_apply.1} parent=39 // pred_check_branch
        %297 = sbr.rel (%p295) target = $region44
      $region43: #{node_apply.1} parent=39 // pred_region
        %s298 = smul.u32 8, %s15
        %p299 = scmp.lt.s32.totalorder %s298, 15
        %s300 = scalar_select %p299, %s298, 15
        %s301 = smul.addr %s300, 8
        %s302 = scalar_lea.vmem %s3, %s301
      $region44: #{node_apply.1} parent=39 // pred_fallthru
        _
    $region40: #{node_apply.1} parent=5 // pred_fallthru
      _
  $region6: #{node_apply.1} parent=0 // loop_footer
    %s13 = sadd.s32 1, %s9
  $region7: #{node_apply.1} parent=0 // loop_footer_branch
    %8 = sbr.rel target = $region3
  $region8: #{node_apply.1} parent=0 // loop_exit
    _

</llo_original>
